<compile_context>
chip_gen: v7x
topology: tpu7x:2x2x1
jax: 0.10.0
libtpu: 0.0.40
codegen_flags: <defaults>
</compile_context>

<pallas_src>
import jax
import jax.numpy as jnp
from jax.experimental import pallas as pl
from jax.experimental.pallas import tpu as pltpu

_TARGET_TILE_BYTES = 4 * 1024 * 1024     # ~4 MiB per VMEM buffer
_VMEM_LIMIT_BYTES = 48 * 1024 * 1024     # fits v7x (64 MiB) and v5e/v6e (128 MiB)
_FALLBACK_CHUNK = 128 * 1024             # elems/block on the non-128-multiple path


def _round_up(x, m):
    return ((x + m - 1) // m) * m


def _cdiv(a, b):
    return -(-a // b)


def _sublane(dtype):
    return {4: 8, 2: 16, 1: 32}.get(jnp.dtype(dtype).itemsize, 8)


def _pick_lane(total, sub):
    # Largest lane width (multiple of 128) dividing total; prefer one whose
    # row count is sublane-aligned so every store is an unmasked vst.
    cands = [lane for lane in (512, 256, 128) if total % lane == 0]
    for lane in cands:
        if (total // lane) % sub == 0:
            return lane
    return cands[0]


def _fadein_kernel(coef_ref, a_ref, b_ref, o_ref):
    # coef_ref: (2,) f32 in SMEM = [1 - alpha, alpha]; a/b/o: 2-D VMEM tiles.
    beta = coef_ref[0]
    alpha = coef_ref[1]
    a = a_ref[...].astype(jnp.float32)
    b = b_ref[...].astype(jnp.float32)
    # Two-multiply form: matches torch.add(x0.mul(1-alpha), x1.mul(alpha)).
    o_ref[...] = (a * beta + b * alpha).astype(o_ref.dtype)


@jax.jit
def _fadein_impl(x0, x1, alpha):
    orig_shape = x0.shape
    dtype = x0.dtype
    total = x0.size
    itemsize = jnp.dtype(dtype).itemsize
    sub = _sublane(dtype)

    if total % 128 == 0:
        # Main path: lane-dense (rows, lane) view, tiled along rows.
        lane = _pick_lane(total, sub)
        rows = total // lane
        a2 = x0.reshape(rows, lane)
        b2 = x1.reshape(rows, lane)
        cap = max(sub, (_TARGET_TILE_BYTES // (lane * itemsize)) // sub * sub)
        if rows <= sub:
            tile_rows = rows                          # full-dim block (tiny tensor)
        else:
            # Aim for >=~4 grid steps (dual-TC on v7x) without exceeding ~4 MiB.
            tile_rows = min(cap, _round_up(_cdiv(rows, 4), sub))
        grid = (_cdiv(rows, tile_rows),)
        block = (tile_rows, lane)
        index_map = lambda i: (i, 0)
    else:
        # Rare path: element count not a multiple of 128. (1, total) view,
        # tiled along the lane dim; ragged tail handled by masked stores.
        a2 = x0.reshape(1, total)
        b2 = x1.reshape(1, total)
        chunk = total if total <= _FALLBACK_CHUNK else _FALLBACK_CHUNK
        grid = (_cdiv(total, chunk),)
        block = (1, chunk)
        index_map = lambda i: (0, i)

    coefs = jnp.stack([1.0 - alpha, alpha]).astype(jnp.float32)

    out2 = pl.pallas_call(
        _fadein_kernel,
        out_shape=jax.ShapeDtypeStruct(a2.shape, dtype),
        grid=grid,
        in_specs=[
            pl.BlockSpec(memory_space=pltpu.MemorySpace.SMEM),  # [1-alpha, alpha]
            pl.BlockSpec(block, index_map),                     # x[0] tile
            pl.BlockSpec(block, index_map),                     # x[1] tile
        ],
        out_specs=pl.BlockSpec(block, index_map),
        compiler_params=pltpu.CompilerParams(
            dimension_semantics=("parallel",),
            vmem_limit_bytes=_VMEM_LIMIT_BYTES,
        ),
        cost_estimate=pl.CostEstimate(
            flops=3 * total,
            transcendentals=0,
            bytes_accessed=3 * total * itemsize,
        ),
    )(coefs, a2, b2)

    return out2.reshape(orig_shape)


def fadein(x0, x1, alpha):
    """Equivalent of fadein_layer.forward([x0, x1]) with self.alpha = alpha."""
    assert x0.shape == x1.shape and x0.dtype == x1.dtype
    return _fadein_impl(x0, x1, jnp.float32(alpha))


class FadeinLayer:
    """JAX mirror of the PyTorch fadein_layer module."""

    def __init__(self, config=None):
        self.alpha = 0.0

    def update_alpha(self, delta):
        self.alpha = max(0.0, min(self.alpha + delta, 1.0))

    def __call__(self, x):
        # x is a pair [low_res_branch, high_res_branch]
        return fadein(x[0], x[1], self.alpha)


if __name__ == "__main__":
    key = jax.random.PRNGKey(0)
    layer = FadeinLayer(config=None)
    layer.update_alpha(0.3)  # alpha = 0.3
    alpha = layer.alpha

    def ref_blend(a, b):
        return (a.astype(jnp.float32) * (1.0 - alpha)
                + b.astype(jnp.float32) * alpha).astype(a.dtype)

    ks = jax.random.split(key, 10)

    # Case 1: canonical small NCHW shape (total % 128 == 0).
    s1 = (2, 4, 16, 16)
    x0 = jax.random.normal(ks[0], s1, dtype=jnp.float32)
    x1 = jax.random.normal(ks[1], s1, dtype=jnp.float32)
    o1 = jax.block_until_ready(layer([x0, x1]))
    assert o1.shape == s1 and o1.dtype == x0.dtype
    assert jnp.allclose(o1, ref_blend(x0, x1), atol=1e-6, rtol=1e-6)

    # Case 2: awkward element count (not a multiple of 128) -> fallback path.
    s2 = (2, 3, 7, 7)
    y0 = jax.random.normal(ks[2], s2, dtype=jnp.float32)
    y1 = jax.random.normal(ks[3], s2, dtype=jnp.float32)
    o2 = jax.block_until_ready(layer([y0, y1]))
    assert o2.shape == s2 and o2.dtype == y0.dtype
    assert jnp.allclose(o2, ref_blend(y0, y1), atol=1e-6, rtol=1e-6)

    # Case 3: multi-step grid with a ragged last row-block (45 rows x 512).
    s3 = (2, 5, 48, 48)
    z0 = jax.random.normal(ks[4], s3, dtype=jnp.float32)
    z1 = jax.random.normal(ks[5], s3, dtype=jnp.float32)
    o3 = jax.block_until_ready(layer([z0, z1]))
    assert jnp.allclose(o3, ref_blend(z0, z1), atol=1e-6, rtol=1e-6)

    # Case 4: bf16 inputs (exercises dtype-aware sublane rounding).
    s4 = (2, 4, 16, 16)
    w0 = jax.random.normal(ks[6], s4, dtype=jnp.float32).astype(jnp.bfloat16)
    w1 = jax.random.normal(ks[7], s4, dtype=jnp.float32).astype(jnp.bfloat16)
    o4 = jax.block_until_ready(layer([w0, w1]))
    assert o4.dtype == jnp.bfloat16
    assert jnp.allclose(o4.astype(jnp.float32),
                        ref_blend(w0, w1).astype(jnp.float32),
                        atol=2e-2, rtol=2e-2)

    # Case 5: tiny tensor whose row count is not sublane-aligned (384 elems
    # -> (3, 128) full-array block).
    s5 = (2, 3, 8, 8)
    v0 = jax.random.normal(ks[8], s5, dtype=jnp.float32)
    v1 = jax.random.normal(ks[9], s5, dtype=jnp.float32)
    o5 = jax.block_until_ready(layer([v0, v1]))
    assert jnp.allclose(o5, ref_blend(v0, v1), atol=1e-6, rtol=1e-6)

    print("KERNEL_OK")
</pallas_src>

<mosaic_0001>
module attributes {stable_mosaic.version = 11 : i64} {
  func.func @_fadein_kernel(%arg0: i32, %arg1: memref<2xf32, #tpu.memory_space<smem>>, %arg2: memref<8x256xf32, #tpu.memory_space<vmem>>, %arg3: memref<8x256xf32, #tpu.memory_space<vmem>>, %arg4: memref<8x256xf32, #tpu.memory_space<vmem>>) attributes {dimension_semantics = [#tpu.dimension_semantics<parallel>], iteration_bounds = array<i64: 1>, scalar_prefetch = 0 : i64, scratch_operands = 0 : i64, tpu.core_type = #tpu.core_type<tc>, window_params = [{transform_indices = @transform_0, window_bounds = array<i64: 2>}, {transform_indices = @transform_1, window_bounds = array<i64: 8, 256>}, {transform_indices = @transform_2, window_bounds = array<i64: 8, 256>}, {transform_indices = @transform_3, window_bounds = array<i64: 8, 256>}]} {
    %c0 = arith.constant 0 : index
    %0 = memref.load %arg1[%c0] : memref<2xf32, #tpu.memory_space<smem>>
    %c1 = arith.constant 1 : index
    %1 = memref.load %arg1[%c1] : memref<2xf32, #tpu.memory_space<smem>>
    %c0_0 = arith.constant 0 : index
    %c0_1 = arith.constant 0 : index
    %2 = vector.load %arg2[%c0_0, %c0_1] : memref<8x256xf32, #tpu.memory_space<vmem>>, vector<8x256xf32>
    %c0_2 = arith.constant 0 : index
    %c0_3 = arith.constant 0 : index
    %3 = vector.load %arg3[%c0_2, %c0_3] : memref<8x256xf32, #tpu.memory_space<vmem>>, vector<8x256xf32>
    %4 = vector.broadcast %0 : f32 to vector<8x256xf32>
    %5 = arith.mulf %2, %4 : vector<8x256xf32>
    %6 = vector.broadcast %1 : f32 to vector<8x256xf32>
    %7 = arith.mulf %3, %6 : vector<8x256xf32>
    %8 = arith.addf %5, %7 : vector<8x256xf32>
    %c0_4 = arith.constant 0 : index
    %c0_5 = arith.constant 0 : index
    %9 = vector.load %arg4[%c0_4, %c0_5] : memref<8x256xf32, #tpu.memory_space<vmem>>, vector<8x256xf32>
    tpu.vector_store %arg4[%c0_4, %c0_5], %8 {strides = array<i32>} : memref<8x256xf32, #tpu.memory_space<vmem>>, vector<8x256xf32>,
    return
  }
  func.func @transform_0(%arg0: i32) -> i32 {
    %c0_i32 = arith.constant 0 : i32
    %c0_i32_0 = arith.constant 0 : i32
    return %c0_i32 : i32
  }
  func.func @transform_1(%arg0: i32) -> (i32, i32) {
    %c0_i32 = arith.constant 0 : i32
    %c0_i32_0 = arith.constant 0 : i32
    return %arg0, %c0_i32 : i32, i32
  }
  func.func @transform_2(%arg0: i32) -> (i32, i32) {
    %c0_i32 = arith.constant 0 : i32
    %c0_i32_0 = arith.constant 0 : i32
    return %arg0, %c0_i32 : i32, i32
  }
  func.func @transform_3(%arg0: i32) -> (i32, i32) {
    %c0_i32 = arith.constant 0 : i32
    %c0_i32_0 = arith.constant 0 : i32
    return %arg0, %c0_i32 : i32, i32
  }
}

</mosaic_0001>

<llo_original>
// kernel: _fadein_impl.1
$region0: #{_fadein_impl.1}
  #allocation0 [shape = 'u32[]', space=smem, size = 0x4, offset = 0x4, fixed_abs, tag = 'smem constant byte address 0x4 - core index']
  #allocation1 [shape = 'u32[144,128]{1,0:T(1,128)}', space=vmem, size = 0x12000, scoped, tag = 'internal scratch']
  %s0 = inlined_call_operand.vmem [shape: f32[2], index: 0, kind: input, shape index: {}]
  %s1 = inlined_call_operand.vmem [shape: f32[8,256], index: 1, kind: input, shape index: {}]
  %s2 = inlined_call_operand.vmem [shape: f32[8,256], index: 2, kind: input, shape index: {}]
  %s3 = inlined_call_operand.vmem [shape: f32[8,256], index: 3, kind: output, shape index: {}]
  %s4 = sld [smem:[#allocation0]]
  $region26: #{_fadein_impl.1} parent=0
    _
  %s6 = ssub.s32 1, %s4
  %s7 = scalar_select 0, %s6, %s4
  $region1: #{_fadein_impl.1} parent=0
    #allocation2 [shape = 'u8[512]{0}', space=smem, size = 0x200, scoped, tag = 'input window, operand 0, single buffered']
    #allocation3 [shape = 's32[1]{0}', space=sflag, size = 0x4, scoped, tag = 'scoped memory for _fadein_impl.1']
    %8 = vsyncpa [#allocation3], 0
    // Predicated region
    $region2: #{_fadein_impl.1} parent=1 // pred_check
      _
    $region3: #{_fadein_impl.1} parent=1 // pred_check_branch
      %10 = sbr.rel (0) target = $region5
    $region4: #{_fadein_impl.1} parent=1 // pred_region
      %s12 = ssub.s32 16, 16
      %13 = vsyncadd [#allocation3], %s12
      %s15 = sshll.u32 %s0, 4
      %s16 = int_to_ptr.vmem [resolvable:$true] %s15
      %18 = dma.vmem_to_smem %s16, 16, [#allocation2], [#allocation3]
    $region5: #{_fadein_impl.1} parent=1 // pred_fallthru
      _
    // Predicated region
    $region6: #{_fadein_impl.1} parent=1 // pred_check
      _
    $region7: #{_fadein_impl.1} parent=1 // pred_check_branch
      %20 = sbr.rel (0) target = $region9
    $region8: #{_fadein_impl.1} parent=1 // pred_region
      _
    $region9: #{_fadein_impl.1} parent=1 // pred_fallthru
      _
    // Predicated region
    $region10: #{_fadein_impl.1} parent=1 // pred_check
      _
    $region11: #{_fadein_impl.1} parent=1 // pred_check_branch
      %22 = sbr.rel (0) target = $region13
    $region12: #{_fadein_impl.1} parent=1 // pred_region
      _
    $region13: #{_fadein_impl.1} parent=1 // pred_fallthru
      _
    // Predicated region
    $region14: #{_fadein_impl.1} parent=1 // pred_check
      _
    $region15: #{_fadein_impl.1} parent=1 // pred_check_branch
      %24 = sbr.rel (0) target = $region17
    $region16: #{_fadein_impl.1} parent=1 // pred_region
      %25 = dma.done [#allocation3], 16
    $region17: #{_fadein_impl.1} parent=1 // pred_fallthru
      _
    %26 = sfence
    %s27 = sld [smem:[#allocation2]]
    %s28 = sld [smem:[#allocation2 + $0x1]]
    %v29 = vld [vmem:[%s1] sm:$0xff]
    %v30 = vld [vmem:[%s1 + $0x8] sm:$0xff]
    %v31 = vld [vmem:[%s2] sm:$0xff]
    %v32 = vld [vmem:[%s2 + $0x8] sm:$0xff]
    %v33 = vstv %s27
    %v34 = vmul.f32 %v29, %v33
    %v35 = vmul.f32 %v30, %v33
    %v36 = vstv %s28
    %v37 = vmul.f32 %v31, %v36
    %v38 = vmul.f32 %v32, %v36
    %v39 = vadd.f32 %v34, %v37
    %v40 = vadd.f32 %v35, %v38
    %41 = vst [vmem:[%s3] sm:$0xff] %v39
    %42 = vst [vmem:[%s3 + $0x8] sm:$0xff] %v40
    // Predicated region
    $region18: #{_fadein_impl.1} parent=1 // pred_check
      _
    $region19: #{_fadein_impl.1} parent=1 // pred_check_branch
      %44 = sbr.rel (0) target = $region21
    $region20: #{_fadein_impl.1} parent=1 // pred_region
      _
    $region21: #{_fadein_impl.1} parent=1 // pred_fallthru
      _
    // Predicated region
    $region22: #{_fadein_impl.1} parent=1 // pred_check
      _
    $region23: #{_fadein_impl.1} parent=1 // pred_check_branch
      %46 = sbr.rel (0) target = $region25
    $region24: #{_fadein_impl.1} parent=1 // pred_region
      _
    $region25: #{_fadein_impl.1} parent=1 // pred_fallthru
      _
    %47 = vsyncpa [#allocation3], 1

</llo_original>
